<compile_context>
chip_gen: v6e
topology: v6e:2x2x1
jax: 0.10.0
libtpu: 0.0.40
codegen_flags: <defaults>
</compile_context>

<pallas_src>
import jax
import jax.numpy as jnp
from jax.experimental import pallas as pl
from jax.experimental.pallas import tpu as pltpu

INIT_W = 1.0          # value passed to scalar(init_weights) in the reference code
BATCH_TILE = 256      # rows per grid step for large batches (multiple of 8)


def scalar_kernel(w_ref, o_ref):
    # w_ref: (1, 1) f32, resident in VMEM for the whole grid.
    # o_ref: (TB, 1) output tile.
    sig = 1.0 / (1.0 + jnp.exp(-w_ref[...]))                  # (1, 1) f32, EUP exp
    o_ref[...] = jnp.broadcast_to(sig, o_ref.shape).astype(o_ref.dtype)


def scalar_forward(x, w):
    """x: (B, ...) — only x.shape[0] is used (matches the PyTorch module).
    w: scalar parameter (0-d or (1,1) f32).  Returns (B, 1) f32 = sigmoid(w)."""
    B = x.shape[0]
    # Block second-minor dim must be a multiple of 8 or equal the full extent.
    tb = BATCH_TILE if B >= BATCH_TILE else B
    grid = (pl.cdiv(B, tb),)

    w2d = jnp.reshape(jnp.asarray(w, dtype=jnp.float32), (1, 1))

    return pl.pallas_call(
        scalar_kernel,
        out_shape=jax.ShapeDtypeStruct((B, 1), jnp.float32),
        grid=grid,
        in_specs=[
            # Constant index_map: w stays in VMEM across all batch tiles.
            pl.BlockSpec((1, 1), lambda i: (0, 0)),
        ],
        # Last dim 1 == full array extent; batch axis tiled and pipelined.
        # TODO(synk): output last-dim of 1 (< 128 lanes) forces masked stores,
        # but that is dictated by the module's (B, 1) output contract.
        out_specs=pl.BlockSpec((tb, 1), lambda i: (i, 0)),
        compiler_params=pltpu.CompilerParams(
            dimension_semantics=("parallel",),   # shard batch tiles across TCs (v7x)
        ),
    )(w2d)


def reference_forward(x, w):
    B = x.shape[0]
    return jax.nn.sigmoid(jnp.asarray(w, jnp.float32)) * jnp.ones((B, 1), jnp.float32)


if __name__ == "__main__":
    key = jax.random.PRNGKey(0)

    batch = 8
    feat = 16
    # x values are never read by the forward pass (only its batch dim), exactly
    # like the PyTorch module; still build it deterministically for realism.
    x = jax.random.normal(key, (batch, feat), jnp.float32)
    w = jnp.float32(INIT_W)

    out = scalar_forward(x, w)
    out = jax.block_until_ready(out)

    ref = reference_forward(x, w)
    assert out.shape == (batch, 1), f"bad output shape {out.shape}"
    assert jnp.allclose(out, ref, atol=1e-5, rtol=1e-5), "mismatch vs reference"

    print("KERNEL_OK")
</pallas_src>

<mosaic_0001>
module attributes {stable_mosaic.version = 11 : i64} {
  func.func @scalar_kernel(%arg0: i32, %arg1: memref<1x1xf32, #tpu.memory_space<vmem>>, %arg2: memref<8x1xf32, #tpu.memory_space<vmem>>) attributes {dimension_semantics = [#tpu.dimension_semantics<parallel>], iteration_bounds = array<i64: 1>, scalar_prefetch = 0 : i64, scratch_operands = 0 : i64, tpu.core_type = #tpu.core_type<tc>, window_params = [{pipeline_mode = #tpu.pipeline_mode<synchronous>, transform_indices = @transform_0, window_bounds = array<i64: 1, 1>}, {transform_indices = @transform_1, window_bounds = array<i64: 8, 1>}]} {
    %c0 = arith.constant 0 : index
    %c0_0 = arith.constant 0 : index
    %0 = vector.load %arg1[%c0, %c0_0] : memref<1x1xf32, #tpu.memory_space<vmem>>, vector<1x1xf32>
    %cst = arith.constant 0.000000e+00 : f32
    %1 = vector.broadcast %cst : f32 to vector<1x1xf32>
    %2 = arith.subf %1, %0 : vector<1x1xf32>
    %3 = math.exp %2 : vector<1x1xf32>
    %cst_1 = arith.constant 1.000000e+00 : f32
    %4 = vector.broadcast %cst_1 : f32 to vector<1x1xf32>
    %5 = arith.addf %4, %3 : vector<1x1xf32>
    %cst_2 = arith.constant 1.000000e+00 : f32
    %6 = vector.broadcast %cst_2 : f32 to vector<1x1xf32>
    %7 = arith.divf %6, %5 : vector<1x1xf32>
    %8 = vector.shape_cast %7 : vector<1x1xf32> to vector<1x1xf32>
    %9 = vector.broadcast %8 : vector<1x1xf32> to vector<8x1xf32>
    %c0_3 = arith.constant 0 : index
    %c0_4 = arith.constant 0 : index
    %10 = vector.load %arg2[%c0_3, %c0_4] : memref<8x1xf32, #tpu.memory_space<vmem>>, vector<8x1xf32>
    tpu.vector_store %arg2[%c0_3, %c0_4], %9 {strides = array<i32>} : memref<8x1xf32, #tpu.memory_space<vmem>>, vector<8x1xf32>,
    return
  }
  func.func @transform_0(%arg0: i32) -> (i32, i32) {
    %c0_i32 = arith.constant 0 : i32
    %c0_i32_0 = arith.constant 0 : i32
    %c0_i32_1 = arith.constant 0 : i32
    return %c0_i32, %c0_i32_0 : i32, i32
  }
  func.func @transform_1(%arg0: i32) -> (i32, i32) {
    %c0_i32 = arith.constant 0 : i32
    %c0_i32_0 = arith.constant 0 : i32
    return %arg0, %c0_i32 : i32, i32
  }
}

</mosaic_0001>

<llo_original>
// kernel: tpu_custom_call.1
$region0: #{tpu_custom_call.1}
  #allocation0 [shape = 'u32[]', space=smem, size = 0x4, offset = 0x4, fixed_abs, tag = 'smem constant byte address 0x4 - core index']
  #allocation1 [shape = 'u32[144,128]{1,0:T(1,128)}', space=vmem, size = 0x12000, scoped, tag = 'internal scratch']
  #allocation2 [shape = 'f32[1,1]{1,0:T(1,128)S(1)}', space=vmem, size = 0x200, scoped, tag = 'scoped memory for tpu_custom_call.1']
  %s0 = inlined_call_operand.<no memory space> [shape: f32[1,1], index: 0, kind: input, shape index: {}]
  %s1 = inlined_call_operand.vmem [shape: f32[8,1], index: 1, kind: output, shape index: {}]
  %s2 = sld [smem:[#allocation0]]
  $region14: #{tpu_custom_call.1} parent=0
    _
  %s4 = ssub.s32 1, %s2
  %s5 = scalar_select 0, %s4, %s2
  %v6 = vstv %s0
  %7 = vst [vmem:[#allocation2] sm:$0x1] %v6
  // Predicated region
  $region2: #{tpu_custom_call.1} parent=0 // pred_check
    _
  $region3: #{tpu_custom_call.1} parent=0 // pred_check_branch
    %9 = sbr.rel (0) target = $region5
  $region4: #{tpu_custom_call.1} parent=0 // pred_region
    _
  $region5: #{tpu_custom_call.1} parent=0 // pred_fallthru
    _
  %v10 = vld [vmem:[#allocation2] sm:$0x1]
  %v11 = vsub.f32 0.0, %v10
  %v12 = vmul.f32 %v11, 1.442695
  %v13 = vpow.pop %v12
  %v14 = vadd.f32 %v13, 1.0
  %v15 = vrcp.pop %v14
  %v16 = vmul.f32 1.0, %v15
  %v18 = vlaneseq
  %v19 = vshrl.u32 %v18, 7
  %v20 = vsub.s32 0, %v19
  %v21 = vrot.slane %v16, %v20
  %vm23 = vcmask 7168
  %24 = vst.msk [vmem:[%s1] sm:$0xff] %vm23, %v21
  // Predicated region
  $region6: #{tpu_custom_call.1} parent=0 // pred_check
    _
  $region7: #{tpu_custom_call.1} parent=0 // pred_check_branch
    %26 = sbr.rel (0) target = $region9
  $region8: #{tpu_custom_call.1} parent=0 // pred_region
    _
  $region9: #{tpu_custom_call.1} parent=0 // pred_fallthru
    _
  // Predicated region
  $region10: #{tpu_custom_call.1} parent=0 // pred_check
    _
  $region11: #{tpu_custom_call.1} parent=0 // pred_check_branch
    %28 = sbr.rel (0) target = $region13
  $region12: #{tpu_custom_call.1} parent=0 // pred_region
    _
  $region13: #{tpu_custom_call.1} parent=0 // pred_fallthru
    _

</llo_original>
